<compile_context>
chip_gen: v7x
topology: tpu7x:2x2x1
jax: 0.10.0
libtpu: 0.0.40
codegen_flags: <defaults>
</compile_context>

<pallas_src>
import functools
import math

import jax
import jax.numpy as jnp
from jax import lax
from jax.experimental import pallas as pl
from jax.experimental.pallas import tpu as pltpu


# ----------------------------- kernels --------------------------------------


def _kernel_single_k(x_ref, w_ref, b_ref, o_ref):
    """2-D grid (M_tiles, N_tiles); whole K in one block, no scratch."""
    acc = jnp.dot(x_ref[...], w_ref[...], preferred_element_type=jnp.float32)
    o_ref[...] = (acc + b_ref[...]).astype(o_ref.dtype)


def _kernel_multi_k_f32(x_ref, w_ref, b_ref, o_ref, *, k_rem):
    """3-D grid (M, N, K); f32 output accumulates directly into o_ref."""
    k = pl.program_id(2)

    @pl.when(k == 0)
    def _():
        o_ref[...] = jnp.broadcast_to(b_ref[...], o_ref.shape).astype(o_ref.dtype)

    x = x_ref[...]
    if k_rem:  # static: only emit mask code when K is ragged w.r.t. tk
        limit = jnp.where(k == pl.num_programs(2) - 1, k_rem, x.shape[1])
        col = lax.broadcasted_iota(jnp.int32, x.shape, 1)
        x = jnp.where(col < limit, x, jnp.zeros_like(x))

    o_ref[...] += jnp.dot(x, w_ref[...], preferred_element_type=jnp.float32)


def _kernel_multi_k_scratch(x_ref, w_ref, b_ref, o_ref, acc_ref, *, k_rem):
    """3-D grid (M, N, K); narrow output dtype -> f32 scratch accumulator."""
    k = pl.program_id(2)

    @pl.when(k == 0)
    def _():
        acc_ref[...] = jnp.broadcast_to(b_ref[...], acc_ref.shape).astype(jnp.float32)

    x = x_ref[...]
    if k_rem:
        limit = jnp.where(k == pl.num_programs(2) - 1, k_rem, x.shape[1])
        col = lax.broadcasted_iota(jnp.int32, x.shape, 1)
        x = jnp.where(col < limit, x, jnp.zeros_like(x))

    acc_ref[...] += jnp.dot(x, w_ref[...], preferred_element_type=jnp.float32)

    @pl.when(k == pl.num_programs(2) - 1)
    def _():
        o_ref[...] = acc_ref[...].astype(o_ref.dtype)


# ----------------------------- tiling helpers --------------------------------


def _round_up(x, m):
    return (x + m - 1) // m * m


def _vmem_capacity_bytes():
    """Best-effort physical VMEM query; conservative fallback (v7x per-TC)."""
    try:
        info = pltpu.get_tpu_info()
    except Exception:
        return 64 * 1024 * 1024
    for attr in ("vmem_capacity_bytes", "vmem_size_bytes", "vmem_bytes"):
        v = getattr(info, attr, None)
        if isinstance(v, (int, float)) and v > 0:
            return int(v)
    return 64 * 1024 * 1024


def _tile_caps():
    """Generation-aware tile caps + scoped-VMEM budget."""
    vmem = _vmem_capacity_bytes()
    if vmem >= 100 * 1024 * 1024:
        # v5e / v6e: 128 MiB physical VMEM, bandwidth-starved -> big tiles so
        # weights/activations are re-streamed from HBM as few times as possible.
        return 512, 1024, 1024, 64 * 1024 * 1024
    # v7x (64 MiB per-TC) or unknown: smaller tiles, default-ish scoped budget.
    return 256, 512, 512, 32 * 1024 * 1024


# ----------------------------- wrapper ---------------------------------------


@functools.partial(jax.jit, static_argnames=("tm", "tn", "tk"))
def linear_norm(x, weight, bias, *, tm=None, tn=None, tk=None):
    """y = x @ weight.T + bias, matching torch.nn.Linear semantics.

    x:      (..., in_dim)
    weight: (out_dim, in_dim)   (PyTorch convention)
    bias:   (out_dim,)
    tm/tn/tk act as optional tile-size caps (static).
    """
    in_dim = x.shape[-1]
    out_dim = weight.shape[0]
    lead = x.shape[:-1]
    M = math.prod(lead) if lead else 1
    K = in_dim

    x2 = x.reshape(M, K)

    itemsize = jnp.dtype(x.dtype).itemsize
    sublane = max(8, 32 // itemsize)  # 8 f32, 16 bf16, 32 int8/fp8

    cap_tm, cap_tn, cap_tk, vmem_limit = _tile_caps()
    if tm is not None:
        cap_tm = int(tm)
    if tn is not None:
        cap_tn = int(tn)
    if tk is not None:
        cap_tk = int(tk)

    # ---- M tile: full dim, else MXU-edge (256) / sublane-pack aligned ----
    if M <= cap_tm:
        tm_ = M
    else:
        if cap_tm >= 256:
            tm_ = (cap_tm // 256) * 256
        else:
            tm_ = max((cap_tm // sublane) * sublane, sublane)

    # ---- N tile: either the full out_dim (single block, no padding at all),
    # or a multiple of 128 that exactly divides the padded width Np ----
    if out_dim <= cap_tn:
        tn_ = out_dim
        Np = out_dim
    else:
        Np = _round_up(out_dim, 128)
        q = Np // 128
        divs = [d for d in range(1, q + 1) if q % d == 0 and d * 128 <= cap_tn]
        tn_ = (divs[-1] if divs else 1) * 128

    # ---- K tile: full dim, else prefer an exact 128-multiple divisor of K;
    # otherwise a 128-multiple cap with in-kernel masking of the ragged tail ----
    if K <= cap_tk:
        tk_ = K
    else:
        base = max((cap_tk // 128) * 128, 128)
        tk_ = base
        cand = base
        while cand >= 128:
            if K % cand == 0:
                tk_ = cand
                break
            cand -= 128

    grid_k = pl.cdiv(K, tk_)
    k_rem = (K % tk_) if grid_k > 1 else 0
    Kp = grid_k * tk_ if k_rem else K  # weight-only zero pad along K when ragged

    grid_m = pl.cdiv(M, tm_)
    grid_n = pl.cdiv(out_dim, tn_)  # == Np // tn_ by construction

    # ---- keep both TensorCores of a v7x chip busy: never a 1x1 parallel grid
    if grid_m * grid_n == 1 and M >= 2 * sublane:
        tm_ = _round_up(pl.cdiv(M, 2), sublane)
        grid_m = pl.cdiv(M, tm_)

    # ---- one-pass weight relayout: transpose to (K, N) so the kernel does a
    # plain MXU matmul (no per-tile transposes); fuse ragged-K/N zero pads in.
    wt = jnp.transpose(weight)  # (K, out_dim)
    b = bias
    pad_k = Kp - K
    pad_n = Np - out_dim
    if pad_k or pad_n:
        wt = jnp.pad(wt, ((0, pad_k), (0, pad_n)))
        if pad_n:
            b = jnp.pad(b, (0, pad_n))
    b2 = b.reshape(1, Np)

    out_shape = jax.ShapeDtypeStruct((M, out_dim), x.dtype)
    cost = pl.CostEstimate(
        flops=2 * M * K * out_dim,
        transcendentals=0,
        bytes_accessed=(M * K + Kp * Np + Np + M * out_dim) * itemsize,
    )

    if grid_k == 1:
        grid = (grid_m, grid_n)
        dims = ("parallel", "parallel")
        in_specs = [
            pl.BlockSpec((tm_, tk_), lambda i, j: (i, 0)),  # x tile
            pl.BlockSpec((tk_, tn_), lambda i, j: (0, j)),  # w tile
            pl.BlockSpec((1, tn_), lambda i, j: (0, j)),    # bias tile
        ]
        out_spec = pl.BlockSpec((tm_, tn_), lambda i, j: (i, j))
        kernel = _kernel_single_k
        scratch = []
    else:
        grid = (grid_m, grid_n, grid_k)
        dims = ("parallel", "parallel", "arbitrary")
        in_specs = [
            pl.BlockSpec((tm_, tk_), lambda i, j, k: (i, k)),  # x tile
            pl.BlockSpec((tk_, tn_), lambda i, j, k: (k, j)),  # w tile
            pl.BlockSpec((1, tn_), lambda i, j, k: (0, j)),    # bias tile
        ]
        out_spec = pl.BlockSpec((tm_, tn_), lambda i, j, k: (i, j))
        if jnp.dtype(x.dtype) == jnp.dtype(jnp.float32):
            # f32 output: accumulate directly into o_ref (resident across K).
            kernel = functools.partial(_kernel_multi_k_f32, k_rem=k_rem)
            scratch = []
        else:
            kernel = functools.partial(_kernel_multi_k_scratch, k_rem=k_rem)
            scratch = [pltpu.VMEM((tm_, tn_), jnp.float32)]

    out = pl.pallas_call(
        kernel,
        out_shape=out_shape,
        grid_spec=pltpu.PrefetchScalarGridSpec(
            num_scalar_prefetch=0,
            grid=grid,
            in_specs=in_specs,
            out_specs=out_spec,
            scratch_shapes=scratch,
        ),
        compiler_params=pltpu.CompilerParams(
            dimension_semantics=dims,
            vmem_limit_bytes=vmem_limit,
        ),
        cost_estimate=cost,
    )(x2, wt, b2)

    return out.reshape(*lead, out_dim)


# ----------------------------- init (matches LinearNorm.__init__) ------------


def init_linear_norm_params(key, in_dim, out_dim, w_init_gain="linear",
                            dtype=jnp.float32):
    """xavier_uniform_(weight, gain=calculate_gain('linear')=1.0) plus PyTorch's
    default Linear bias init uniform(-1/sqrt(fan_in), 1/sqrt(fan_in))."""
    gain = 1.0  # calculate_gain('linear') == 1.0
    k_w, k_b = jax.random.split(key)
    bound_w = gain * math.sqrt(6.0 / (in_dim + out_dim))
    weight = jax.random.uniform(
        k_w, (out_dim, in_dim), dtype=dtype, minval=-bound_w, maxval=bound_w
    )
    bound_b = 1.0 / math.sqrt(in_dim)
    bias = jax.random.uniform(
        k_b, (out_dim,), dtype=dtype, minval=-bound_b, maxval=bound_b
    )
    return weight, bias


# ----------------------------- demo / check ----------------------------------

if __name__ == "__main__":
    key = jax.random.PRNGKey(0)
    ks = jax.random.split(key, 8)

    # Case 1: small shapes, single-K fast path (out_dim < 128 -> masked store
    # of the only N block; no padding / post-slice anywhere).
    x1 = jax.random.normal(ks[0], (2, 8, 32), dtype=jnp.float32)
    w1, b1 = init_linear_norm_params(ks[1], 32, 64)
    y1 = linear_norm(x1, w1, b1)
    jax.block_until_ready(y1)
    r1 = x1 @ w1.T + b1
    assert y1.shape == (2, 8, 64)
    assert jnp.allclose(y1, r1, atol=1e-4, rtol=1e-4)

    # Case 2: K-tiled accumulator path (force tk cap) with an exact 128-multiple
    # K divisor -> no masking, f32 accumulate directly into the output block.
    x2 = jax.random.normal(ks[2], (2, 4, 640), dtype=jnp.float32)
    w2, b2 = init_linear_norm_params(ks[3], 640, 96)
    y2 = linear_norm(x2, w2, b2, tk=256)
    jax.block_until_ready(y2)
    r2 = x2 @ w2.T + b2
    assert y2.shape == (2, 4, 96)
    assert jnp.allclose(y2, r2, atol=1e-4, rtol=1e-4)

    # Case 3: ragged K (700 % 256 != 0) -> in-kernel zero-mask of the last K
    # tile (no wrapper-side padding of x).
    x3 = jax.random.normal(ks[4], (2, 4, 700), dtype=jnp.float32)
    w3, b3 = init_linear_norm_params(ks[5], 700, 64)
    y3 = linear_norm(x3, w3, b3, tk=256)
    jax.block_until_ready(y3)
    r3 = x3 @ w3.T + b3
    assert y3.shape == (2, 4, 64)
    assert jnp.allclose(y3, r3, atol=1e-4, rtol=1e-4)

    # Case 4: out_dim > tn cap and not a multiple of tn -> tn divides padded Np,
    # ragged trailing N block handled by a single masked output store.
    x4 = jax.random.normal(ks[6], (2, 4, 64), dtype=jnp.float32)
    w4, b4 = init_linear_norm_params(ks[7], 64, 320)
    y4 = linear_norm(x4, w4, b4, tn=256)
    jax.block_until_ready(y4)
    r4 = x4 @ w4.T + b4
    assert y4.shape == (2, 4, 320)
    assert jnp.allclose(y4, r4, atol=1e-4, rtol=1e-4)

    print("KERNEL_OK")
</pallas_src>

<mosaic_0001>
module attributes {stable_mosaic.version = 11 : i64} {
  func.func @_kernel_single_k(%arg0: i32, %arg1: i32, %arg2: memref<8x32xf32, #tpu.memory_space<vmem>>, %arg3: memref<32x64xf32, #tpu.memory_space<vmem>>, %arg4: memref<1x64xf32, #tpu.memory_space<vmem>>, %arg5: memref<8x64xf32, #tpu.memory_space<vmem>>) attributes {dimension_semantics = [#tpu.dimension_semantics<parallel>, #tpu.dimension_semantics<parallel>], iteration_bounds = array<i64: 2, 1>, scalar_prefetch = 0 : i64, scratch_operands = 0 : i64, tpu.core_type = #tpu.core_type<tc>, window_params = [{transform_indices = @transform_0, window_bounds = array<i64: 8, 32>}, {transform_indices = @transform_1, window_bounds = array<i64: 32, 64>}, {transform_indices = @transform_2, window_bounds = array<i64: 1, 64>}, {transform_indices = @transform_3, window_bounds = array<i64: 8, 64>}]} {
    %c0 = arith.constant 0 : index
    %c0_0 = arith.constant 0 : index
    %0 = vector.load %arg2[%c0, %c0_0] : memref<8x32xf32, #tpu.memory_space<vmem>>, vector<8x32xf32>
    %c0_1 = arith.constant 0 : index
    %c0_2 = arith.constant 0 : index
    %1 = vector.load %arg3[%c0_1, %c0_2] : memref<32x64xf32, #tpu.memory_space<vmem>>, vector<32x64xf32>
    %cst = arith.constant dense<0.000000e+00> : vector<8x64xf32>
    %2 = tpu.matmul %0, %1, %cst {dimension_numbers = #tpu.dot_dimension_numbers<[1], [0], [0], [1], [0, 0, 1, 1], [], []>} : vector<8x32xf32>, vector<32x64xf32>, vector<8x64xf32> -> vector<8x64xf32>
    %c0_3 = arith.constant 0 : index
    %c0_4 = arith.constant 0 : index
    %3 = vector.load %arg4[%c0_3, %c0_4] : memref<1x64xf32, #tpu.memory_space<vmem>>, vector<1x64xf32>
    %4 = vector.broadcast %3 : vector<1x64xf32> to vector<8x64xf32>
    %5 = arith.addf %2, %4 : vector<8x64xf32>
    %c0_5 = arith.constant 0 : index
    %c0_6 = arith.constant 0 : index
    %6 = vector.load %arg5[%c0_5, %c0_6] : memref<8x64xf32, #tpu.memory_space<vmem>>, vector<8x64xf32>
    tpu.vector_store %arg5[%c0_5, %c0_6], %5 {strides = array<i32>} : memref<8x64xf32, #tpu.memory_space<vmem>>, vector<8x64xf32>,
    return
  }
  func.func @transform_0(%arg0: i32, %arg1: i32) -> (i32, i32) {
    %c0_i32 = arith.constant 0 : i32
    %c0_i32_0 = arith.constant 0 : i32
    return %arg0, %c0_i32 : i32, i32
  }
  func.func @transform_1(%arg0: i32, %arg1: i32) -> (i32, i32) {
    %c0_i32 = arith.constant 0 : i32
    %c0_i32_0 = arith.constant 0 : i32
    return %c0_i32, %arg1 : i32, i32
  }
  func.func @transform_2(%arg0: i32, %arg1: i32) -> (i32, i32) {
    %c0_i32 = arith.constant 0 : i32
    %c0_i32_0 = arith.constant 0 : i32
    return %c0_i32, %arg1 : i32, i32
  }
  func.func @transform_3(%arg0: i32, %arg1: i32) -> (i32, i32) {
    %c0_i32 = arith.constant 0 : i32
    return %arg0, %arg1 : i32, i32
  }
}

</mosaic_0001>

<llo_original>
// kernel: linear_norm.1
$region0: #{linear_norm.1}
  #allocation0 [shape = 'u32[]', space=smem, size = 0x4, offset = 0x4, fixed_abs, tag = 'smem constant byte address 0x4 - core index']
  #allocation1 [shape = 'u32[144,128]{1,0:T(1,128)}', space=vmem, size = 0x12000, scoped, tag = 'internal scratch']
  %s0 = inlined_call_operand.hbm [shape: f32[16,32], index: 0, kind: input, shape index: {}]
  %s1 = inlined_call_operand.hbm [shape: f32[32,64], index: 1, kind: input, shape index: {}]
  %s2 = inlined_call_operand.vmem [shape: f32[1,64], index: 2, kind: input, shape index: {}]
  %s3 = inlined_call_operand.hbm [shape: f32[16,64], index: 3, kind: output, shape index: {}]
  %s4 = sld [smem:[#allocation0]]
  $region53: #{linear_norm.1} parent=0
    _
  %s6 = ssub.s32 1, %s4
  %s7 = scalar_select 0, %s6, %s4
  $region1: #{linear_norm.1} parent=0
    #allocation2 [shape = 'u8[8192]{0}', space=vmem, size = 0x2000, scoped, tag = 'input window, operand 0']
    #allocation3 [shape = 's32[2]{0}', space=sflag, size = 0x8, scoped, tag = 'scoped memory for linear_norm.1']
    #allocation4 [shape = 's32[2]{0}', space=sflag, size = 0x8, scoped, tag = 'scoped memory for linear_norm.1']
    #allocation5 [shape = 'u8[16384]{0}', space=vmem, size = 0x4000, scoped, tag = 'input window, operand 1, single buffered']
    #allocation6 [shape = 's32[1]{0}', space=sflag, size = 0x4, scoped, tag = 'scoped memory for linear_norm.1']
    #allocation7 [shape = 'u8[8192]{0}', space=vmem, size = 0x2000, scoped, tag = 'output window, operand 0']
    %8 = vsyncpa [#allocation3], 0
    %s9 = scalar_lea.sflag [#allocation3], 1
    %10 = vsyncpa %s9, 0
    %11 = vsyncpa [#allocation6], 0
    %12 = vsyncpa [#allocation4], 0
    %s13 = scalar_lea.sflag [#allocation4], 1
    %14 = vsyncpa %s13, 0
    loop: start=0, step=1, limit=4
    $region2: #{linear_norm.1} parent=1 // loop_pre_header
      _
    $region3: #{linear_norm.1} parent=1 // loop_header
      %s16 = sphi 0, %s20
      %p17 = scmp.ge.s32.totalorder %s16, 4
      %s23 = sphi 0, %s35
      %s24 = sphi 0, %s31
      %s25 = sphi 0, %s23
      %s26 = sphi 0, %s24
      %s27 = sphi 0, %s25
      %s28 = sphi 0, %s26
      %s38 = sphi 0, %s40
      %s41 = sphi 0, %s38
      %s42 = sphi 0, %s41
      %s58 = sphi 0, %s42
      %s64 = sphi 0, %s66
      %s67 = sphi 0, %s64
      %s68 = sphi 0, %s67
      %s84 = sphi 0, %s68
      %s90 = sphi 0, %s92
      %s93 = sphi 0, %s90
      %s94 = sphi 0, %s93
      %s110 = sphi 0, %s94
      %s118 = sphi 0, %s120
      %s121 = sphi 0, %s118
      %s122 = sphi 0, %s121
      %s138 = sphi 0, %s122
    $region4: #{linear_norm.1} parent=1 // loop_header_branch
      %19 = sbr.rel (%p17) target = $region8
    $region5: #{linear_norm.1} parent=1 // loop_body
      %s21 = ssub.s32 %s16, 1
      %s22 = ssub.s32 %s16, 2
      %s29 = sadd.s32 1, %s24
      %p30 = scmp.ge.s32.totalorder %s29, 1
      %s31 = scalar_select %p30, 0, %s29
      %s32 = sadd.s32 1, %s23
      %s33 = scalar_select %p30, %s32, %s23
      %p34 = scmp.ge.s32.totalorder %s33, 2
      %s35 = scalar_select %p34, 0, %s33
      %s36 = ssub.s32 %s23, %s35
      %p37 = scmp.eq.s32.totalorder %s36, 0
      %s39 = sadd.s32 %s38, 1
      %s40 = scalar_select %p37, %s38, %s39
      %p43 = pneg %p37
      %p44 = scmp.eq.s32.totalorder %s16, 1
      %p45 = por %p43, %p44
      %p46 = scmp.ne.s32.totalorder %s38, %s41
      %p47 = scmp.eq.s32.totalorder %s16, 0
      %p48 = por %p46, %p47
      %p49 = scmp.ne.s32.totalorder %s38, %s41
      %p50 = scmp.eq.s32.totalorder %s21, 1
      %p51 = por %p49, %p50
      %p52 = scmp.ne.s32.totalorder %s41, %s42
      %p53 = scmp.eq.s32.totalorder %s21, 0
      %p54 = por %p52, %p53
      %p55 = scmp.ne.s32.totalorder %s41, %s42
      %p56 = scmp.eq.s32.totalorder %s22, 1
      %p57 = por %p55, %p56
      %p59 = scmp.ne.s32.totalorder %s42, %s58
      %p60 = scmp.eq.s32.totalorder %s22, 0
      %p61 = por %p59, %p60
      %s62 = ssub.s32 %s24, %s31
      %p63 = scmp.eq.s32.totalorder %s62, 0
      %s65 = sadd.s32 %s64, 1
      %s66 = scalar_select %p63, %s64, %s65
      %p69 = pneg %p63
      %p70 = scmp.eq.s32.totalorder %s16, 1
      %p71 = por %p69, %p70
      %p72 = scmp.ne.s32.totalorder %s64, %s67
      %p73 = scmp.eq.s32.totalorder %s16, 0
      %p74 = por %p72, %p73
      %p75 = scmp.ne.s32.totalorder %s64, %s67
      %p76 = scmp.eq.s32.totalorder %s21, 1
      %p77 = por %p75, %p76
      %p78 = scmp.ne.s32.totalorder %s67, %s68
      %p79 = scmp.eq.s32.totalorder %s21, 0
      %p80 = por %p78, %p79
      %p81 = scmp.ne.s32.totalorder %s67, %s68
      %p82 = scmp.eq.s32.totalorder %s22, 1
      %p83 = por %p81, %p82
      %p85 = scmp.ne.s32.totalorder %s68, %s84
      %p86 = scmp.eq.s32.totalorder %s22, 0
      %p87 = por %p85, %p86
      %s88 = ssub.s32 %s24, %s31
      %p89 = scmp.eq.s32.totalorder %s88, 0
      %s91 = sadd.s32 %s90, 1
      %s92 = scalar_select %p89, %s90, %s91
      %p95 = pneg %p89
      %p96 = scmp.eq.s32.totalorder %s16, 1
      %p97 = por %p95, %p96
      %p98 = scmp.ne.s32.totalorder %s90, %s93
      %p99 = scmp.eq.s32.totalorder %s16, 0
      %p100 = por %p98, %p99
      %p101 = scmp.ne.s32.totalorder %s90, %s93
      %p102 = scmp.eq.s32.totalorder %s21, 1
      %p103 = por %p101, %p102
      %p104 = scmp.ne.s32.totalorder %s93, %s94
      %p105 = scmp.eq.s32.totalorder %s21, 0
      %p106 = por %p104, %p105
      %p107 = scmp.ne.s32.totalorder %s93, %s94
      %p108 = scmp.eq.s32.totalorder %s22, 1
      %p109 = por %p107, %p108
      %p111 = scmp.ne.s32.totalorder %s94, %s110
      %p112 = scmp.eq.s32.totalorder %s22, 0
      %p113 = por %p111, %p112
      %s114 = ssub.s32 %s23, %s35
      %s115 = ssub.s32 %s24, %s31
      %s116 = sor.u32 %s114, %s115
      %p117 = scmp.eq.s32.totalorder %s116, 0
      %s119 = sadd.s32 %s118, 1
      %s120 = scalar_select %p117, %s118, %s119
      %p123 = pneg %p117
      %p124 = scmp.eq.s32.totalorder %s16, 1
      %p125 = por %p123, %p124
      %p126 = scmp.ne.s32.totalorder %s118, %s121
      %p127 = scmp.eq.s32.totalorder %s16, 0
      %p128 = por %p126, %p127
      %p129 = scmp.ne.s32.totalorder %s118, %s121
      %p130 = scmp.eq.s32.totalorder %s21, 1
      %p131 = por %p129, %p130
      %p132 = scmp.ne.s32.totalorder %s121, %s122
      %p133 = scmp.eq.s32.totalorder %s21, 0
      %p134 = por %p132, %p133
      %p135 = scmp.ne.s32.totalorder %s121, %s122
      %p136 = scmp.eq.s32.totalorder %s22, 1
      %p137 = por %p135, %p136
      %p139 = scmp.ne.s32.totalorder %s122, %s138
      %p140 = scmp.eq.s32.totalorder %s22, 0
      %p141 = por %p139, %p140
      %p142 = scmp.le.s32.totalorder 1, %s16
      %p143 = scmp.lt.s32.totalorder %s16, 3
      %p144 = pnand %p142, %p143
      %p145 = pneg %p144
      // Predicated region
      $region9: #{linear_norm.1} parent=5 // pred_check
        _
      $region10: #{linear_norm.1} parent=5 // pred_check_branch
        %147 = sbr.rel (%p144) target = $region12
      $region11: #{linear_norm.1} parent=5 // pred_region
        %s148 = ssub.s32 %s16, 1
        // Predicated region
        $region13: #{linear_norm.1} parent=11 // pred_check
          %p149 = pneg %p80
        $region14: #{linear_norm.1} parent=11 // pred_check_branch
          %151 = sbr.rel (%p149) target = $region16
        $region15: #{linear_norm.1} parent=11 // pred_region
          %s153 = ssub.s32 512, 512
          %154 = vsyncadd [#allocation6], %s153
          %s155 = smul.addr %s26, 128
          %s156 = scalar_lea.hbm %s1, %s155
          %s157 = sshll.u32 [#allocation5], 4
          %s158 = int_to_ptr.vmem [resolvable:$true] %s157
          %163 = dma.hbm_to_vmem [thread:$0]  %s156, 512, %s158, [#allocation6], 128, 128, 8
        $region16: #{linear_norm.1} parent=11 // pred_fallthru
          _
        // Predicated region
        $region17: #{linear_norm.1} parent=11 // pred_check
          %p164 = pneg %p106
        $region18: #{linear_norm.1} parent=11 // pred_check_branch
          %166 = sbr.rel (%p164) target = $region20
        $region19: #{linear_norm.1} parent=11 // pred_region
          %p167 = scmp.lt.s32.totalorder %s26, 0
          %s168 = scalar_select %p167, %s26, 0
          %s169 = scalar_lea.vmem %s2, %s168
        $region20: #{linear_norm.1} parent=11 // pred_fallthru
          _
      $region12: #{linear_norm.1} parent=5 // pred_fallthru
        _
      %p170 = scmp.lt.s32.totalorder %s16, 2
      // Predicated region
      $region21: #{linear_norm.1} parent=5 // pred_check
        %p171 = pneg %p170
      $region22: #{linear_norm.1} parent=5 // pred_check_branch
        %173 = sbr.rel (%p171) target = $region24
      $region23: #{linear_norm.1} parent=5 // pred_region
        // Predicated region
        $region25: #{linear_norm.1} parent=23 // pred_check
          %p174 = pneg %p48
        $region26: #{linear_norm.1} parent=23 // pred_check_branch
          %176 = sbr.rel (%p174) target = $region28
        $region27: #{linear_norm.1} parent=23 // pred_region
          %s177 = sand.u32 %s38, 1
          %s178 = scalar_lea.sflag [#allocation3], %s177
          %s179 = sand.u32 %s38, 1
          %s180 = smul.addr %s179, 8
          %s181 = scalar_lea.vmem [#allocation2], %s180
          %s183 = ssub.s32 128, 128
          %184 = vsyncadd %s178, %s183
          %s185 = smul.addr %s23, 128
          %s186 = scalar_lea.hbm %s0, %s185
          %s188 = sshll.u32 %s181, 4
          %s189 = int_to_ptr.vmem [resolvable:$true] %s188
          %191 = dma.hbm_to_vmem [thread:$0]  %s186, 128, %s189, %s178
        $region28: #{linear_norm.1} parent=23 // pred_fallthru
          _
      $region24: #{linear_norm.1} parent=5 // pred_fallthru
        _
      %p192 = scmp.le.s32.totalorder 1, %s16
      %p193 = scmp.lt.s32.totalorder %s16, 3
      %p194 = pnand %p192, %p193
      %p195 = pneg %p194
      // Predicated region
      $region29: #{linear_norm.1} parent=5 // pred_check
        _
      $region30: #{linear_norm.1} parent=5 // pred_check_branch
        %197 = sbr.rel (%p194) target = $region32
      $region31: #{linear_norm.1} parent=5 // pred_region
        %s198 = ssub.s32 %s16, 1
        %s199 = sand.u32 %s41, 1
        %s200 = scalar_lea.sflag [#allocation3], %s199
        %s201 = sand.u32 %s41, 1
        %s202 = smul.addr %s201, 8
        %s203 = scalar_lea.vmem [#allocation2], %s202
        // Predicated region
        $region33: #{linear_norm.1} parent=31 // pred_check
          %p204 = pneg %p54
        $region34: #{linear_norm.1} parent=31 // pred_check_branch
          %206 = sbr.rel (%p204) target = $region36
        $region35: #{linear_norm.1} parent=31 // pred_region
          %207 = dma.done %s200, 128
        $region36: #{linear_norm.1} parent=31 // pred_fallthru
          _
        // Predicated region
        $region37: #{linear_norm.1} parent=31 // pred_check
          %p208 = pneg %p80
        $region38: #{linear_norm.1} parent=31 // pred_check_branch
          %210 = sbr.rel (%p208) target = $region40
        $region39: #{linear_norm.1} parent=31 // pred_region
          %211 = dma.done [#allocation6], 512
        $region40: #{linear_norm.1} parent=31 // pred_fallthru
          _
        %s212 = sand.u32 %s41, 1
        %s213 = scalar_lea.sflag [#allocation3], %s212
        %s214 = sand.u32 %s41, 1
        %s215 = smul.addr %s214, 8
        %s216 = scalar_lea.vmem [#allocation2], %s215
        %p217 = pneg %p54
        %p218 = pneg %p51
        %p219 = pneg %p80
        %p220 = pneg %p77
        %p221 = scmp.lt.s32.totalorder %s26, 0
        %s222 = scalar_select %p221, %s26, 0
        %s223 = scalar_lea.vmem %s2, %s222
        %p224 = pneg %p106
        %p225 = pneg %p103
        %p226 = pneg %p134
        %p227 = pneg %p131
        %s228 = sand.u32 %s121, 1
        %s229 = scalar_lea.sflag [#allocation4], %s228
        %s230 = sand.u32 %s121, 1
        %s231 = smul.addr %s230, 8
        %s232 = scalar_lea.vmem [#allocation7], %s231
        %p233 = scmp.lt.s32.totalorder %s26, 0
        %s234 = scalar_select %p233, %s26, 0
        %s235 = scalar_lea.vmem %s2, %s234
        %v236 = vld [vmem:[%s203] sm:$0xff]
        %v237 = vld [vmem:[#allocation5] sm:$0xff]
        %v238 = vld [vmem:[#allocation5 + $0x8] sm:$0xff]
        %v239 = vld [vmem:[#allocation5 + $0x10] sm:$0xff]
        %v240 = vld [vmem:[#allocation5 + $0x18] sm:$0xff]
        %v241 = vld [vmem:[%s235] sm:$0x1]
        %v243 = vlaneseq
        %v244 = vshrl.u32 %v243, 7
        %v245 = vsub.s32 0, %v244
        %v246 = vrot.slane %v241, %v245
        %vm248 = vcmask 261120
        %v250 = vsel %vm248, %v236, 0
        %252 = vmatprep.subr.mxu0 0.0
        %253 = vmatpush1.msra.mxu0 %v237
        %254 = vmatprep.subr.mxu0 0.0
        %255 = vmatpush1.msra.mxu0 %v238
        %256 = vmatprep.subr.mxu0 0.0
        %257 = vmatpush1.msra.mxu0 %v239
        %258 = vmatprep.subr.mxu0 0.0
        %259 = vmatpush1.msra.mxu0 %v240
        %260 = vmatprep.subr.mxu0 0.0
        %261 = vmatpush1.msra.mxu0 0.0
        %262 = vmatprep.subr.mxu0 0.0
        %263 = vmatpush1.msra.mxu0 0.0
        %264 = vmatprep.subr.mxu0 0.0
        %265 = vmatpush1.msra.mxu0 0.0
        %266 = vmatprep.subr.mxu0 0.0
        %267 = vmatpush1.msra.mxu0 0.0
        %268 = vmatprep.subr.mxu0 0.0
        %269 = vmatpush1.msra.mxu0 0.0
        %270 = vmatprep.subr.mxu0 0.0
        %271 = vmatpush1.msra.mxu0 0.0
        %272 = vmatprep.subr.mxu0 0.0
        %273 = vmatpush1.msra.mxu0 0.0
        %274 = vmatprep.subr.mxu0 0.0
        %275 = vmatpush1.msra.mxu0 0.0
        %276 = vmatprep.subr.mxu0 0.0
        %277 = vmatpush1.msra.mxu0 0.0
        %278 = vmatprep.subr.mxu0 0.0
        %279 = vmatpush1.msra.mxu0 0.0
        %280 = vmatprep.subr.mxu0 0.0
        %281 = vmatpush1.msra.mxu0 0.0
        %282 = vmatprep.subr.mxu0 0.0
        %283 = vmatpush1.msra.mxu0 0.0
        %284 = vmatprep.subr.mxu0 0.0
        %285 = vmatpush1.msra.mxu0 0.0
        %286 = vmatprep.subr.mxu0 0.0
        %287 = vmatpush1.msra.mxu0 0.0
        %288 = vmatprep.subr.mxu0 0.0
        %289 = vmatpush1.msra.mxu0 0.0
        %290 = vmatprep.subr.mxu0 0.0
        %291 = vmatpush1.msra.mxu0 0.0
        %292 = vmatprep.subr.mxu0 0.0
        %293 = vmatpush1.msra.mxu0 0.0
        %294 = vmatprep.subr.mxu0 0.0
        %295 = vmatpush1.msra.mxu0 0.0
        %296 = vmatprep.subr.mxu0 0.0
        %297 = vmatpush1.msra.mxu0 0.0
        %298 = vmatprep.subr.mxu0 0.0
        %299 = vmatpush1.msra.mxu0 0.0
        %300 = vmatprep.subr.mxu0 0.0
        %301 = vmatpush1.msra.mxu0 0.0
        %302 = vmatprep.subr.mxu0 0.0
        %303 = vmatpush1.msra.mxu0 0.0
        %304 = vmatprep.subr.mxu0 0.0
        %305 = vmatpush1.msra.mxu0 0.0
        %306 = vmatprep.subr.mxu0 0.0
        %307 = vmatpush1.msra.mxu0 0.0
        %308 = vmatprep.subr.mxu0 0.0
        %309 = vmatpush1.msra.mxu0 0.0
        %310 = vmatprep.subr.mxu0 0.0
        %311 = vmatpush1.msra.mxu0 0.0
        %312 = vmatprep.subr.mxu0 0.0
        %313 = vmatpush1.msra.mxu0 0.0
        %314 = vmatprep.subr.mxu0 0.0
        %315 = vmatpush1.msra.mxu0 0.0
        %316 = vmatprep.mubr.f32.mxu0 0.0
        %317 = vmatmul.mubr.f32.gmra.mrb[0].mxu0 %v250
        %v318 = vpop.f32.mrb[0].mxu0
        %v319 = vadd.f32 %v246, %v318
        %v320 = vpop.f32.mrb[0].mxu0
        %321 = vdwg.mxu0
        %vm322 = vcmask 523264
        %323 = vst.msk [vmem:[%s232] sm:$0xff] %vm322, %v319
        %s324 = sand.u32 %s121, 1
        %s325 = scalar_lea.sflag [#allocation4], %s324
        %s326 = sand.u32 %s121, 1
        %s327 = smul.addr %s326, 8
        %s328 = scalar_lea.vmem [#allocation7], %s327
        // Predicated region
        $region41: #{linear_norm.1} parent=31 // pred_check
          %p329 = pneg %p131
        $region42: #{linear_norm.1} parent=31 // pred_check_branch
          %331 = sbr.rel (%p329) target = $region44
        $region43: #{linear_norm.1} parent=31 // pred_region
          %s333 = ssub.s32 128, 128
          %334 = vsyncadd %s325, %s333
          %s335 = sadd.s32 %s26, %s25
          %s336 = smul.addr %s335, 128
          %s337 = scalar_lea.hbm %s3, %s336
          %s339 = sshll.u32 %s328, 4
          %s340 = int_to_ptr.vmem [resolvable:$true] %s339
          %342 = dma.vmem_to_hbm [thread:$0]  %s340, 128, %s337, %s325
        $region44: #{linear_norm.1} parent=31 // pred_fallthru
          _
      $region32: #{linear_norm.1} parent=5 // pred_fallthru
        _
      %p343 = scmp.le.s32.totalorder 2, %s16
      // Predicated region
      $region45: #{linear_norm.1} parent=5 // pred_check
        %p344 = pneg %p343
      $region46: #{linear_norm.1} parent=5 // pred_check_branch
        %346 = sbr.rel (%p344) target = $region48
      $region47: #{linear_norm.1} parent=5 // pred_region
        %s347 = ssub.s32 %s16, 2
        // Predicated region
        $region49: #{linear_norm.1} parent=47 // pred_check
          %p348 = pneg %p137
        $region50: #{linear_norm.1} parent=47 // pred_check_branch
          %350 = sbr.rel (%p348) target = $region52
        $region51: #{linear_norm.1} parent=47 // pred_region
          %s351 = sand.u32 %s122, 1
          %s352 = scalar_lea.sflag [#allocation4], %s351
          %s353 = sand.u32 %s122, 1
          %s354 = smul.addr %s353, 8
          %s355 = scalar_lea.vmem [#allocation7], %s354
          %356 = dma.done %s352, 128
        $region52: #{linear_norm.1} parent=47 // pred_fallthru
          _
      $region48: #{linear_norm.1} parent=5 // pred_fallthru
        _
    $region6: #{linear_norm.1} parent=1 // loop_footer
      %s20 = sadd.s32 1, %s16
    $region7: #{linear_norm.1} parent=1 // loop_footer_branch
      %15 = sbr.rel target = $region3
    $region8: #{linear_norm.1} parent=1 // loop_exit
      _
    %357 = vsyncpa [#allocation3], 1
    %s358 = scalar_lea.sflag [#allocation3], 1
    %359 = vsyncpa %s358, 1
    %360 = vsyncpa [#allocation6], 1
    %361 = vsyncpa [#allocation4], 1
    %s362 = scalar_lea.sflag [#allocation4], 1
    %363 = vsyncpa %s362, 1

</llo_original>
